<compile_context>
chip_gen: v5e
topology: v5e:2x2
jax: 0.10.0
libtpu: 0.0.40
codegen_flags: <defaults>
</compile_context>

<pallas_src>
import jax
import jax.numpy as jnp
from jax.experimental import pallas as pl
from jax.experimental.pallas import tpu as pltpu


def autoencoder_kernel(x_ref, w_enc_t_ref, b_enc_ref, w_dec_t_ref, b_dec_ref,
                       xbar_ref, h_ref):
    # Encoder: h = x @ W_enc_T + b_enc    (W_enc_T is [n_input, n_z_pad])
    x = x_ref[...]
    h_f32 = jnp.dot(x, w_enc_t_ref[...], preferred_element_type=jnp.float32)
    h_f32 = h_f32 + b_enc_ref[...]                 # (1, n_z_pad) broadcast over batch tile
    h_out = h_f32.astype(h_ref.dtype)
    h_ref[...] = h_out                             # lane-dense (n_z padded to 128) store

    # Decoder: x_bar = h @ W_dec_T + b_dec  (W_dec_T is [n_z_pad, n_input], padded rows = 0)
    # Use the stored-precision h so decoder input == returned h.
    x_bar = jnp.dot(h_out, w_dec_t_ref[...], preferred_element_type=jnp.float32)
    x_bar = x_bar + b_dec_ref[...]                 # (1, n_input) broadcast
    xbar_ref[...] = x_bar.astype(xbar_ref.dtype)


def _round_up(a, b):
    return (a + b - 1) // b * b


def autoencoder_forward(x, w_enc, b_enc, w_dec, b_dec):
    """x: [B, n_input]; w_enc: [n_z, n_input]; b_enc: [n_z];
       w_dec: [n_input, n_z]; b_dec: [n_input].  Returns (x_bar, h)."""
    B, n_input = x.shape
    n_z = w_enc.shape[0]
    dt = x.dtype

    # ---- one-time (tiny) weight relayout: transpose to [in, out] and pad n_z to 128 lanes
    n_z_pad = _round_up(n_z, 128)
    w_enc_t = jnp.zeros((n_input, n_z_pad), dt).at[:, :n_z].set(w_enc.T.astype(dt))
    b_enc_p = jnp.zeros((1, n_z_pad), dt).at[:, :n_z].set(b_enc.astype(dt))
    w_dec_t = jnp.zeros((n_z_pad, n_input), dt).at[:n_z, :].set(w_dec.T.astype(dt))
    b_dec_2d = b_dec.reshape(1, n_input).astype(dt)

    # ---- batch tile: multiple of 8 sublanes, capped at 512 rows; ~B/2 so that
    # there are >= 2 grid steps for B > 8 (keeps both v7x TCs busy).
    TB = min(max(_round_up(pl.cdiv(B, 2), 8), 8), 512)
    num_tiles = pl.cdiv(B, TB)   # ragged last tile handled by Pallas (no jnp.pad of x)

    out_shapes = (
        jax.ShapeDtypeStruct((B, n_input), dt),    # x_bar
        jax.ShapeDtypeStruct((B, n_z_pad), dt),    # h (lane-dense, sliced below)
    )

    x_bar, h_pad = pl.pallas_call(
        autoencoder_kernel,
        out_shape=out_shapes,
        grid=(num_tiles,),
        in_specs=[
            # x: tiled over batch
            pl.BlockSpec((TB, n_input), lambda i: (i, 0)),
            # weights / biases: constant block -> VMEM-resident across grid steps
            pl.BlockSpec((n_input, n_z_pad), lambda i: (0, 0)),
            pl.BlockSpec((1, n_z_pad), lambda i: (0, 0)),
            pl.BlockSpec((n_z_pad, n_input), lambda i: (0, 0)),
            pl.BlockSpec((1, n_input), lambda i: (0, 0)),
        ],
        out_specs=(
            pl.BlockSpec((TB, n_input), lambda i: (i, 0)),
            pl.BlockSpec((TB, n_z_pad), lambda i: (i, 0)),
        ),
        compiler_params=pltpu.CompilerParams(
            dimension_semantics=("parallel",),      # shards batch tiles across TCs on v7x
        ),
    )(x, w_enc_t, b_enc_p, w_dec_t, b_dec_2d)

    h = h_pad[:, :n_z]     # drop zero lane padding (small array)
    return x_bar, h


def init_autoencoder_params(key, n_input, n_z, dtype=jnp.float32):
    """Matches init_weights: normal(mean=0, std=0.01) weights, zero biases."""
    k_enc, k_dec = jax.random.split(key)
    w_enc = 0.01 * jax.random.normal(k_enc, (n_z, n_input), dtype=dtype)
    b_enc = jnp.zeros((n_z,), dtype=dtype)
    w_dec = 0.01 * jax.random.normal(k_dec, (n_input, n_z), dtype=dtype)
    b_dec = jnp.zeros((n_input,), dtype=dtype)
    return w_enc, b_enc, w_dec, b_dec


if __name__ == "__main__":
    key = jax.random.PRNGKey(0)
    k_x, k_p = jax.random.split(key)

    batch = 8
    n_input = 256
    n_z = 32

    x = jax.random.normal(k_x, (batch, n_input), dtype=jnp.float32)
    w_enc, b_enc, w_dec, b_dec = init_autoencoder_params(k_p, n_input, n_z)

    x_bar, h = autoencoder_forward(x, w_enc, b_enc, w_dec, b_dec)
    jax.block_until_ready((x_bar, h))

    # Pure-JAX reference (same semantics as the PyTorch forward).
    h_ref = x @ w_enc.T + b_enc
    x_bar_ref = h_ref @ w_dec.T + b_dec
    assert h.shape == (batch, n_z) and x_bar.shape == (batch, n_input)
    assert jnp.allclose(h, h_ref, atol=1e-5, rtol=1e-5)
    assert jnp.allclose(x_bar, x_bar_ref, atol=1e-5, rtol=1e-5)

    # Also exercise a ragged / multi-tile batch to cover the cdiv grid path.
    batch2 = 130
    x2 = jax.random.normal(k_x, (batch2, n_input), dtype=jnp.float32)
    x_bar2, h2 = autoencoder_forward(x2, w_enc, b_enc, w_dec, b_dec)
    jax.block_until_ready((x_bar2, h2))
    h2_ref = x2 @ w_enc.T + b_enc
    x_bar2_ref = h2_ref @ w_dec.T + b_dec
    assert jnp.allclose(h2, h2_ref, atol=1e-5, rtol=1e-5)
    assert jnp.allclose(x_bar2, x_bar2_ref, atol=1e-5, rtol=1e-5)

    print("KERNEL_OK")
</pallas_src>

<mosaic_0001>
module attributes {stable_mosaic.version = 11 : i64} {
  func.func @autoencoder_kernel(%arg0: i32, %arg1: memref<8x256xf32, #tpu.memory_space<vmem>>, %arg2: memref<256x128xf32, #tpu.memory_space<vmem>>, %arg3: memref<1x128xf32, #tpu.memory_space<vmem>>, %arg4: memref<128x256xf32, #tpu.memory_space<vmem>>, %arg5: memref<1x256xf32, #tpu.memory_space<vmem>>, %arg6: memref<8x256xf32, #tpu.memory_space<vmem>>, %arg7: memref<8x128xf32, #tpu.memory_space<vmem>>) attributes {dimension_semantics = [#tpu.dimension_semantics<parallel>], iteration_bounds = array<i64: 1>, scalar_prefetch = 0 : i64, scratch_operands = 0 : i64, tpu.core_type = #tpu.core_type<tc>, window_params = [{transform_indices = @transform_0, window_bounds = array<i64: 8, 256>}, {pipeline_mode = #tpu.pipeline_mode<synchronous>, transform_indices = @transform_1, window_bounds = array<i64: 256, 128>}, {pipeline_mode = #tpu.pipeline_mode<synchronous>, transform_indices = @transform_2, window_bounds = array<i64: 1, 128>}, {pipeline_mode = #tpu.pipeline_mode<synchronous>, transform_indices = @transform_3, window_bounds = array<i64: 128, 256>}, {pipeline_mode = #tpu.pipeline_mode<synchronous>, transform_indices = @transform_4, window_bounds = array<i64: 1, 256>}, {transform_indices = @transform_5, window_bounds = array<i64: 8, 256>}, {transform_indices = @transform_6, window_bounds = array<i64: 8, 128>}]} {
    %c0 = arith.constant 0 : index
    %c0_0 = arith.constant 0 : index
    %0 = vector.load %arg1[%c0, %c0_0] : memref<8x256xf32, #tpu.memory_space<vmem>>, vector<8x256xf32>
    %c0_1 = arith.constant 0 : index
    %c0_2 = arith.constant 0 : index
    %1 = vector.load %arg2[%c0_1, %c0_2] : memref<256x128xf32, #tpu.memory_space<vmem>>, vector<256x128xf32>
    %cst = arith.constant dense<0.000000e+00> : vector<8x128xf32>
    %2 = tpu.matmul %0, %1, %cst {dimension_numbers = #tpu.dot_dimension_numbers<[1], [0], [0], [1], [0, 0, 1, 1], [], []>} : vector<8x256xf32>, vector<256x128xf32>, vector<8x128xf32> -> vector<8x128xf32>
    %c0_3 = arith.constant 0 : index
    %c0_4 = arith.constant 0 : index
    %3 = vector.load %arg3[%c0_3, %c0_4] : memref<1x128xf32, #tpu.memory_space<vmem>>, vector<1x128xf32>
    %4 = vector.broadcast %3 : vector<1x128xf32> to vector<8x128xf32>
    %5 = arith.addf %2, %4 : vector<8x128xf32>
    %c0_5 = arith.constant 0 : index
    %c0_6 = arith.constant 0 : index
    %6 = vector.load %arg7[%c0_5, %c0_6] : memref<8x128xf32, #tpu.memory_space<vmem>>, vector<8x128xf32>
    tpu.vector_store %arg7[%c0_5, %c0_6], %5 {strides = array<i32>} : memref<8x128xf32, #tpu.memory_space<vmem>>, vector<8x128xf32>,
    %c0_7 = arith.constant 0 : index
    %c0_8 = arith.constant 0 : index
    %7 = vector.load %arg4[%c0_7, %c0_8] : memref<128x256xf32, #tpu.memory_space<vmem>>, vector<128x256xf32>
    %cst_9 = arith.constant dense<0.000000e+00> : vector<8x256xf32>
    %8 = tpu.matmul %5, %7, %cst_9 {dimension_numbers = #tpu.dot_dimension_numbers<[1], [0], [0], [1], [0, 0, 1, 1], [], []>} : vector<8x128xf32>, vector<128x256xf32>, vector<8x256xf32> -> vector<8x256xf32>
    %c0_10 = arith.constant 0 : index
    %c0_11 = arith.constant 0 : index
    %9 = vector.load %arg5[%c0_10, %c0_11] : memref<1x256xf32, #tpu.memory_space<vmem>>, vector<1x256xf32>
    %10 = vector.broadcast %9 : vector<1x256xf32> to vector<8x256xf32>
    %11 = arith.addf %8, %10 : vector<8x256xf32>
    %c0_12 = arith.constant 0 : index
    %c0_13 = arith.constant 0 : index
    %12 = vector.load %arg6[%c0_12, %c0_13] : memref<8x256xf32, #tpu.memory_space<vmem>>, vector<8x256xf32>
    tpu.vector_store %arg6[%c0_12, %c0_13], %11 {strides = array<i32>} : memref<8x256xf32, #tpu.memory_space<vmem>>, vector<8x256xf32>,
    return
  }
  func.func @transform_0(%arg0: i32) -> (i32, i32) {
    %c0_i32 = arith.constant 0 : i32
    %c0_i32_0 = arith.constant 0 : i32
    return %arg0, %c0_i32 : i32, i32
  }
  func.func @transform_1(%arg0: i32) -> (i32, i32) {
    %c0_i32 = arith.constant 0 : i32
    %c0_i32_0 = arith.constant 0 : i32
    %c0_i32_1 = arith.constant 0 : i32
    return %c0_i32, %c0_i32_0 : i32, i32
  }
  func.func @transform_2(%arg0: i32) -> (i32, i32) {
    %c0_i32 = arith.constant 0 : i32
    %c0_i32_0 = arith.constant 0 : i32
    %c0_i32_1 = arith.constant 0 : i32
    return %c0_i32, %c0_i32_0 : i32, i32
  }
  func.func @transform_3(%arg0: i32) -> (i32, i32) {
    %c0_i32 = arith.constant 0 : i32
    %c0_i32_0 = arith.constant 0 : i32
    %c0_i32_1 = arith.constant 0 : i32
    return %c0_i32, %c0_i32_0 : i32, i32
  }
  func.func @transform_4(%arg0: i32) -> (i32, i32) {
    %c0_i32 = arith.constant 0 : i32
    %c0_i32_0 = arith.constant 0 : i32
    %c0_i32_1 = arith.constant 0 : i32
    return %c0_i32, %c0_i32_0 : i32, i32
  }
  func.func @transform_5(%arg0: i32) -> (i32, i32) {
    %c0_i32 = arith.constant 0 : i32
    %c0_i32_0 = arith.constant 0 : i32
    return %arg0, %c0_i32 : i32, i32
  }
  func.func @transform_6(%arg0: i32) -> (i32, i32) {
    %c0_i32 = arith.constant 0 : i32
    %c0_i32_0 = arith.constant 0 : i32
    return %arg0, %c0_i32 : i32, i32
  }
}

</mosaic_0001>

<llo_original>
// kernel: tpu_custom_call.1
$region0: #{tpu_custom_call.1}
  #allocation0 [shape = 'u32[]', space=smem, size = 0x4, offset = 0x4, fixed_abs, tag = 'smem constant byte address 0x4 - core index']
  #allocation1 [shape = 'u32[72,128]{1,0:T(1,128)}', space=vmem, size = 0x9000, scoped, tag = 'internal scratch']
  %s0 = inlined_call_operand.hbm [shape: f32[8,256], index: 0, kind: input, shape index: {}]
  %s1 = inlined_call_operand.hbm [shape: f32[256,128], index: 1, kind: input, shape index: {}]
  %s2 = inlined_call_operand.vmem [shape: f32[1,128], index: 2, kind: input, shape index: {}]
  %s3 = inlined_call_operand.hbm [shape: f32[128,256], index: 3, kind: input, shape index: {}]
  %s4 = inlined_call_operand.vmem [shape: f32[1,256], index: 4, kind: input, shape index: {}]
  %s5 = inlined_call_operand.hbm [shape: f32[8,256], index: 5, kind: output, shape index: {0}]
  %s6 = inlined_call_operand.hbm [shape: f32[8,128], index: 6, kind: output, shape index: {1}]
  %7 = xla_tuple %s5, %s6
  %s8 = sld [smem:[#allocation0]]
  $region50: #{tpu_custom_call.1} parent=0
    _
  %s10 = ssub.s32 1, %s8
  %s11 = scalar_select 0, %s10, %s8
  $region1: #{tpu_custom_call.1} parent=0
    #allocation2 [shape = 'u8[8192]{0}', space=vmem, size = 0x2000, scoped, tag = 'input window, operand 0, single buffered']
    #allocation3 [shape = 's32[1]{0}', space=sflag, size = 0x4, scoped, tag = 'scoped memory for tpu_custom_call.1']
    #allocation4 [shape = 's32[1]{0}', space=sflag, size = 0x4, scoped, tag = 'scoped memory for tpu_custom_call.1']
    #allocation5 [shape = 'u8[131072]{0}', space=vmem, size = 0x20000, scoped, tag = 'input window, operand 1, single buffered']
    #allocation6 [shape = 's32[1]{0}', space=sflag, size = 0x4, scoped, tag = 'scoped memory for tpu_custom_call.1']
    #allocation7 [shape = 'u8[131072]{0}', space=vmem, size = 0x20000, scoped, tag = 'input window, operand 3, single buffered']
    #allocation8 [shape = 'u8[8192]{0}', space=vmem, size = 0x2000, scoped, tag = 'output window, operand 0, single buffered']
    #allocation9 [shape = 'u8[4096]{0}', space=vmem, size = 0x1000, scoped, tag = 'output window, operand 1, single buffered']
    #allocation10 [shape = 's32[1]{0}', space=sflag, size = 0x4, scoped, tag = 'scoped memory for tpu_custom_call.1']
    %12 = vsyncpa [#allocation3], 0
    %13 = vsyncpa [#allocation6], 0
    %14 = vsyncpa [#allocation4], 0
    %15 = vsyncpa [#allocation10], 0
    // Predicated region
    $region2: #{tpu_custom_call.1} parent=1 // pred_check
      _
    $region3: #{tpu_custom_call.1} parent=1 // pred_check_branch
      %17 = sbr.rel (0) target = $region5
    $region4: #{tpu_custom_call.1} parent=1 // pred_region
      %19 = vsyncadd [#allocation3], 0
      %s21 = sshll.u32 %s0, 4
      %s22 = int_to_ptr.hbm [resolvable:$true] %s21
      %s23 = sshll.u32 [#allocation2], 4
      %s24 = int_to_ptr.vmem [resolvable:$true] %s23
      %26 = dma.hbm_to_vmem [thread:$0]  %s22, 256, %s24, [#allocation3]
    $region5: #{tpu_custom_call.1} parent=1 // pred_fallthru
      _
    // Predicated region
    $region6: #{tpu_custom_call.1} parent=1 // pred_check
      _
    $region7: #{tpu_custom_call.1} parent=1 // pred_check_branch
      %28 = sbr.rel (0) target = $region9
    $region8: #{tpu_custom_call.1} parent=1 // pred_region
      %30 = vsyncadd [#allocation6], 0
      %s31 = sshll.u32 %s1, 4
      %s32 = int_to_ptr.hbm [resolvable:$true] %s31
      %s33 = sshll.u32 [#allocation5], 4
      %s34 = int_to_ptr.vmem [resolvable:$true] %s33
      %39 = dma.hbm_to_vmem [thread:$0]  %s32, 4096, %s34, [#allocation6], 128, 128, 8
    $region9: #{tpu_custom_call.1} parent=1 // pred_fallthru
      _
    // Predicated region
    $region10: #{tpu_custom_call.1} parent=1 // pred_check
      _
    $region11: #{tpu_custom_call.1} parent=1 // pred_check_branch
      %41 = sbr.rel (0) target = $region13
    $region12: #{tpu_custom_call.1} parent=1 // pred_region
      _
    $region13: #{tpu_custom_call.1} parent=1 // pred_fallthru
      _
    // Predicated region
    $region14: #{tpu_custom_call.1} parent=1 // pred_check
      _
    $region15: #{tpu_custom_call.1} parent=1 // pred_check_branch
      %43 = sbr.rel (0) target = $region17
    $region16: #{tpu_custom_call.1} parent=1 // pred_region
      %45 = vsyncadd [#allocation6], 0
      %s46 = sshll.u32 %s3, 4
      %s47 = int_to_ptr.hbm [resolvable:$true] %s46
      %s48 = sshll.u32 [#allocation7], 4
      %s49 = int_to_ptr.vmem [resolvable:$true] %s48
      %54 = dma.hbm_to_vmem [thread:$0]  %s47, 4096, %s49, [#allocation6], 256, 256, 16
    $region17: #{tpu_custom_call.1} parent=1 // pred_fallthru
      _
    // Predicated region
    $region18: #{tpu_custom_call.1} parent=1 // pred_check
      _
    $region19: #{tpu_custom_call.1} parent=1 // pred_check_branch
      %56 = sbr.rel (0) target = $region21
    $region20: #{tpu_custom_call.1} parent=1 // pred_region
      _
    $region21: #{tpu_custom_call.1} parent=1 // pred_fallthru
      _
    // Predicated region
    $region22: #{tpu_custom_call.1} parent=1 // pred_check
      _
    $region23: #{tpu_custom_call.1} parent=1 // pred_check_branch
      %58 = sbr.rel (0) target = $region25
    $region24: #{tpu_custom_call.1} parent=1 // pred_region
      %60 = dma.done [#allocation3], 256
    $region25: #{tpu_custom_call.1} parent=1 // pred_fallthru
      _
    // Predicated region
    $region26: #{tpu_custom_call.1} parent=1 // pred_check
      _
    $region27: #{tpu_custom_call.1} parent=1 // pred_check_branch
      %62 = sbr.rel (0) target = $region29
    $region28: #{tpu_custom_call.1} parent=1 // pred_region
      %64 = dma.done [#allocation6], 4096
    $region29: #{tpu_custom_call.1} parent=1 // pred_fallthru
      _
    // Predicated region
    $region30: #{tpu_custom_call.1} parent=1 // pred_check
      _
    $region31: #{tpu_custom_call.1} parent=1 // pred_check_branch
      %66 = sbr.rel (0) target = $region33
    $region32: #{tpu_custom_call.1} parent=1 // pred_region
      %68 = dma.done [#allocation6], 4096
    $region33: #{tpu_custom_call.1} parent=1 // pred_fallthru
      _
    %v69 = vld [vmem:[#allocation2] sm:$0xff]
    %v70 = vld [vmem:[#allocation2 + $0x8] sm:$0xff]
    %v71 = vld [vmem:[#allocation5] sm:$0xff]
    %v72 = vld [vmem:[#allocation5 + $0x8] sm:$0xff]
    %v73 = vld [vmem:[#allocation5 + $0x10] sm:$0xff]
    %v74 = vld [vmem:[#allocation5 + $0x18] sm:$0xff]
    %v75 = vld [vmem:[#allocation5 + $0x20] sm:$0xff]
    %v76 = vld [vmem:[#allocation5 + $0x28] sm:$0xff]
    %v77 = vld [vmem:[#allocation5 + $0x30] sm:$0xff]
    %v78 = vld [vmem:[#allocation5 + $0x38] sm:$0xff]
    %v79 = vld [vmem:[#allocation5 + $0x40] sm:$0xff]
    %v80 = vld [vmem:[#allocation5 + $0x48] sm:$0xff]
    %v81 = vld [vmem:[#allocation5 + $0x50] sm:$0xff]
    %v82 = vld [vmem:[#allocation5 + $0x58] sm:$0xff]
    %v83 = vld [vmem:[#allocation5 + $0x60] sm:$0xff]
    %v84 = vld [vmem:[#allocation5 + $0x68] sm:$0xff]
    %v85 = vld [vmem:[#allocation5 + $0x70] sm:$0xff]
    %v86 = vld [vmem:[#allocation5 + $0x78] sm:$0xff]
    %v87 = vld [vmem:[#allocation5 + $0x80] sm:$0xff]
    %v88 = vld [vmem:[#allocation5 + $0x88] sm:$0xff]
    %v89 = vld [vmem:[#allocation5 + $0x90] sm:$0xff]
    %v90 = vld [vmem:[#allocation5 + $0x98] sm:$0xff]
    %v91 = vld [vmem:[#allocation5 + $0xa0] sm:$0xff]
    %v92 = vld [vmem:[#allocation5 + $0xa8] sm:$0xff]
    %v93 = vld [vmem:[#allocation5 + $0xb0] sm:$0xff]
    %v94 = vld [vmem:[#allocation5 + $0xb8] sm:$0xff]
    %v95 = vld [vmem:[#allocation5 + $0xc0] sm:$0xff]
    %v96 = vld [vmem:[#allocation5 + $0xc8] sm:$0xff]
    %v97 = vld [vmem:[#allocation5 + $0xd0] sm:$0xff]
    %v98 = vld [vmem:[#allocation5 + $0xd8] sm:$0xff]
    %v99 = vld [vmem:[#allocation5 + $0xe0] sm:$0xff]
    %v100 = vld [vmem:[#allocation5 + $0xe8] sm:$0xff]
    %v101 = vld [vmem:[#allocation5 + $0xf0] sm:$0xff]
    %v102 = vld [vmem:[#allocation5 + $0xf8] sm:$0xff]
    %v103 = vld [vmem:[%s2] sm:$0x1]
    %v105 = vperm.slane %v103, 0
    %107 = vmatpush.msra.mxu0 %v86
    %108 = vmatpush.msra.mxu0 %v85
    %109 = vmatpush.msra.mxu0 %v84
    %110 = vmatpush.msra.mxu0 %v83
    %111 = vmatpush.msra.mxu0 %v82
    %112 = vmatpush.msra.mxu0 %v81
    %113 = vmatpush.msra.mxu0 %v80
    %114 = vmatpush.msra.mxu0 %v79
    %115 = vmatpush.msra.mxu0 %v78
    %116 = vmatpush.msra.mxu0 %v77
    %117 = vmatpush.msra.mxu0 %v76
    %118 = vmatpush.msra.mxu0 %v75
    %119 = vmatpush.msra.mxu0 %v74
    %120 = vmatpush.msra.mxu0 %v73
    %121 = vmatpush.msra.mxu0 %v72
    %122 = vmatpush.msra.mxu0 %v71
    %123 = vmatmul.f32.gmra.mxu0 %v69
    %v124 = vpop.f32.mrf.mxu0
    %v125 = vadd.f32 %v105, %v124
    %126 = vdwg.mxu0
    %127 = vmatpush.msra.mxu0 %v102
    %128 = vmatpush.msra.mxu0 %v101
    %129 = vmatpush.msra.mxu0 %v100
    %130 = vmatpush.msra.mxu0 %v99
    %131 = vmatpush.msra.mxu0 %v98
    %132 = vmatpush.msra.mxu0 %v97
    %133 = vmatpush.msra.mxu0 %v96
    %134 = vmatpush.msra.mxu0 %v95
    %135 = vmatpush.msra.mxu0 %v94
    %136 = vmatpush.msra.mxu0 %v93
    %137 = vmatpush.msra.mxu0 %v92
    %138 = vmatpush.msra.mxu0 %v91
    %139 = vmatpush.msra.mxu0 %v90
    %140 = vmatpush.msra.mxu0 %v89
    %141 = vmatpush.msra.mxu0 %v88
    %142 = vmatpush.msra.mxu0 %v87
    %143 = vmatmul.f32.gmra.mxu0 %v70
    %v144 = vpop.f32.mrf.mxu0
    %v145 = vadd.f32 %v125, %v144
    %146 = vdwg.mxu0
    %147 = vst [vmem:[#allocation9] sm:$0xff] %v145
    %v148 = vld [vmem:[#allocation7] sm:$0xff]
    %v149 = vld [vmem:[#allocation7 + $0x8] sm:$0xff]
    %v150 = vld [vmem:[#allocation7 + $0x10] sm:$0xff]
    %v151 = vld [vmem:[#allocation7 + $0x18] sm:$0xff]
    %v152 = vld [vmem:[#allocation7 + $0x20] sm:$0xff]
    %v153 = vld [vmem:[#allocation7 + $0x28] sm:$0xff]
    %v154 = vld [vmem:[#allocation7 + $0x30] sm:$0xff]
    %v155 = vld [vmem:[#allocation7 + $0x38] sm:$0xff]
    %v156 = vld [vmem:[#allocation7 + $0x40] sm:$0xff]
    %v157 = vld [vmem:[#allocation7 + $0x48] sm:$0xff]
    %v158 = vld [vmem:[#allocation7 + $0x50] sm:$0xff]
    %v159 = vld [vmem:[#allocation7 + $0x58] sm:$0xff]
    %v160 = vld [vmem:[#allocation7 + $0x60] sm:$0xff]
    %v161 = vld [vmem:[#allocation7 + $0x68] sm:$0xff]
    %v162 = vld [vmem:[#allocation7 + $0x70] sm:$0xff]
    %v163 = vld [vmem:[#allocation7 + $0x78] sm:$0xff]
    %v164 = vld [vmem:[#allocation7 + $0x80] sm:$0xff]
    %v165 = vld [vmem:[#allocation7 + $0x88] sm:$0xff]
    %v166 = vld [vmem:[#allocation7 + $0x90] sm:$0xff]
    %v167 = vld [vmem:[#allocation7 + $0x98] sm:$0xff]
    %v168 = vld [vmem:[#allocation7 + $0xa0] sm:$0xff]
    %v169 = vld [vmem:[#allocation7 + $0xa8] sm:$0xff]
    %v170 = vld [vmem:[#allocation7 + $0xb0] sm:$0xff]
    %v171 = vld [vmem:[#allocation7 + $0xb8] sm:$0xff]
    %v172 = vld [vmem:[#allocation7 + $0xc0] sm:$0xff]
    %v173 = vld [vmem:[#allocation7 + $0xc8] sm:$0xff]
    %v174 = vld [vmem:[#allocation7 + $0xd0] sm:$0xff]
    %v175 = vld [vmem:[#allocation7 + $0xd8] sm:$0xff]
    %v176 = vld [vmem:[#allocation7 + $0xe0] sm:$0xff]
    %v177 = vld [vmem:[#allocation7 + $0xe8] sm:$0xff]
    %v178 = vld [vmem:[#allocation7 + $0xf0] sm:$0xff]
    %v179 = vld [vmem:[#allocation7 + $0xf8] sm:$0xff]
    %v180 = vld [vmem:[%s4] sm:$0x3]
    %v182 = vperm.slane %v180, 0
    %v183 = vperm.slane %v180, 1
    %186 = vmatpush.msra.mxu0 %v178
    %187 = vmatpush.msra.mxu0 %v176
    %188 = vmatpush.msra.mxu0 %v174
    %189 = vmatpush.msra.mxu0 %v172
    %190 = vmatpush.msra.mxu0 %v170
    %191 = vmatpush.msra.mxu0 %v168
    %192 = vmatpush.msra.mxu0 %v166
    %193 = vmatpush.msra.mxu0 %v164
    %194 = vmatpush.msra.mxu0 %v162
    %195 = vmatpush.msra.mxu0 %v160
    %196 = vmatpush.msra.mxu0 %v158
    %197 = vmatpush.msra.mxu0 %v156
    %198 = vmatpush.msra.mxu0 %v154
    %199 = vmatpush.msra.mxu0 %v152
    %200 = vmatpush.msra.mxu0 %v150
    %201 = vmatpush.msra.mxu0 %v148
    %202 = vmatmul.f32.gmra.mxu0 %v145
    %v203 = vpop.f32.mrf.mxu0
    %v204 = vadd.f32 %v182, %v203
    %205 = vdwg.mxu0
    %206 = vmatpush.msra.mxu0 %v179
    %207 = vmatpush.msra.mxu0 %v177
    %208 = vmatpush.msra.mxu0 %v175
    %209 = vmatpush.msra.mxu0 %v173
    %210 = vmatpush.msra.mxu0 %v171
    %211 = vmatpush.msra.mxu0 %v169
    %212 = vmatpush.msra.mxu0 %v167
    %213 = vmatpush.msra.mxu0 %v165
    %214 = vmatpush.msra.mxu0 %v163
    %215 = vmatpush.msra.mxu0 %v161
    %216 = vmatpush.msra.mxu0 %v159
    %217 = vmatpush.msra.mxu0 %v157
    %218 = vmatpush.msra.mxu0 %v155
    %219 = vmatpush.msra.mxu0 %v153
    %220 = vmatpush.msra.mxu0 %v151
    %221 = vmatpush.msra.mxu0 %v149
    %222 = vmatmul.f32.gmra.mxu0 %v145
    %v223 = vpop.f32.mrf.mxu0
    %v224 = vadd.f32 %v183, %v223
    %225 = vdwg.mxu0
    %226 = vst [vmem:[#allocation8] sm:$0xff] %v204
    %227 = vst [vmem:[#allocation8 + $0x8] sm:$0xff] %v224
    // Predicated region
    $region34: #{tpu_custom_call.1} parent=1 // pred_check
      _
    $region35: #{tpu_custom_call.1} parent=1 // pred_check_branch
      %229 = sbr.rel (0) target = $region37
    $region36: #{tpu_custom_call.1} parent=1 // pred_region
      %231 = vsyncadd [#allocation4], 0
      %s233 = sshll.u32 [#allocation8], 4
      %s234 = int_to_ptr.vmem [resolvable:$true] %s233
      %s235 = sshll.u32 %s5, 4
      %s236 = int_to_ptr.hbm [resolvable:$true] %s235
      %238 = dma.vmem_to_hbm [thread:$0]  %s234, 256, %s236, [#allocation4]
    $region37: #{tpu_custom_call.1} parent=1 // pred_fallthru
      _
    // Predicated region
    $region38: #{tpu_custom_call.1} parent=1 // pred_check
      _
    $region39: #{tpu_custom_call.1} parent=1 // pred_check_branch
      %240 = sbr.rel (0) target = $region41
    $region40: #{tpu_custom_call.1} parent=1 // pred_region
      %242 = vsyncadd [#allocation10], 0
      %s244 = sshll.u32 [#allocation9], 4
      %s245 = int_to_ptr.vmem [resolvable:$true] %s244
      %s246 = sshll.u32 %s6, 4
      %s247 = int_to_ptr.hbm [resolvable:$true] %s246
      %249 = dma.vmem_to_hbm [thread:$0]  %s245, 128, %s247, [#allocation10]
    $region41: #{tpu_custom_call.1} parent=1 // pred_fallthru
      _
    // Predicated region
    $region42: #{tpu_custom_call.1} parent=1 // pred_check
      _
    $region43: #{tpu_custom_call.1} parent=1 // pred_check_branch
      %251 = sbr.rel (0) target = $region45
    $region44: #{tpu_custom_call.1} parent=1 // pred_region
      %253 = dma.done [#allocation4], 256
    $region45: #{tpu_custom_call.1} parent=1 // pred_fallthru
      _
    // Predicated region
    $region46: #{tpu_custom_call.1} parent=1 // pred_check
      _
    $region47: #{tpu_custom_call.1} parent=1 // pred_check_branch
      %255 = sbr.rel (0) target = $region49
    $region48: #{tpu_custom_call.1} parent=1 // pred_region
      %257 = dma.done [#allocation10], 128
    $region49: #{tpu_custom_call.1} parent=1 // pred_fallthru
      _
    %258 = vsyncpa [#allocation3], 1
    %259 = vsyncpa [#allocation6], 1
    %260 = vsyncpa [#allocation4], 1
    %261 = vsyncpa [#allocation10], 1

</llo_original>
